<compile_context>
chip_gen: v7x
topology: tpu7x:2x2x1
jax: 0.10.0
libtpu: 0.0.40
codegen_flags: <defaults>
</compile_context>

<pallas_src>
import functools

import jax
import jax.numpy as jnp
import numpy as np
from jax.experimental import pallas as pl
from jax.experimental.pallas import tpu as pltpu


# ----------------------------- configuration -------------------------------
N_FREQS = (4, 4, 4)          # cfg.PE.FREQ  (one entry per input coordinate)
PE_EXP = False               # cfg.PE.EXP
PE_DETERMINISTIC = True      # cfg.PE.DETERMINISTIC
# TODO(synk): cfg.PE.DETERMINISTIC=False (randn frequency init) would be
# sampled on the host and fed through the same (F, 1) frequency input.


def _round_up(a, b):
    return ((a + b - 1) // b) * b


def _cdiv(a, b):
    return (a + b - 1) // b


def make_freq_off_np(n_freqs, exp=False):
    """Per-output-feature frequency and phase offset, in the final row order.

    For each input dim d with n_d frequencies the PyTorch module emits
    [cos(f_1 x_d) .. cos(f_n x_d), sin(f_1 x_d) .. sin(f_n x_d)].  Both halves
    are encoded with a single cos:  sin(z) = cos(z - pi/2).
    Returns (freq, off), each (F, 1) float32 with F = 2 * sum(n_freqs).
    """
    freqs, offs = [], []
    for n in n_freqs:
        ar = np.arange(1, n + 1, dtype=np.float64)
        f = (np.pi * np.power(2.0, ar - 1.0)) if exp else (ar * np.pi / 2.0)
        f = f.astype(np.float32)
        freqs += [f, f]                                           # cos rows, sin rows
        offs += [np.zeros(n, np.float32), np.full(n, -np.pi / 2, np.float32)]
    return (np.concatenate(freqs).reshape(-1, 1),
            np.concatenate(offs).reshape(-1, 1))


# ------------------------------- kernel ------------------------------------
def _pe_kernel(x_ref, freq_ref, off_ref, o_ref, *, n_freqs, transpose_out):
    """One point-tile of the positional encoding.

    x_ref    : (D, tm)  coordinates; dims on sublanes, points on the lane axis
    freq_ref : (F, 1)   per-feature frequency
    off_ref  : (F, 1)   per-feature phase offset (0 for cos rows, -pi/2 for sin)
    o_ref    : (tm, F)  if transpose_out else (F, tm)
    """
    tm = x_ref.shape[1]
    # Replicate each coordinate row into its 2*n_d output rows, already in the
    # final interleaved order (8 rows per dim for n_d=4 -> sublane-aligned,
    # so the concatenate is vreg-aligned and effectively free).
    rows = [jnp.broadcast_to(x_ref[d:d + 1, :], (2 * n, tm))
            for d, n in enumerate(n_freqs)]
    x_exp = jnp.concatenate(rows, axis=0)                         # (F, tm)
    phase = x_exp * freq_ref[...] + off_ref[...]                  # lane-dense VPU
    res = jnp.cos(phase)                                          # single trig pass
    if transpose_out:
        # XLU transpose to point-major so the kernel emits the final layout.
        o_ref[...] = res.T.astype(o_ref.dtype)
    else:
        o_ref[...] = res.astype(o_ref.dtype)


# ------------------------------- wrapper ------------------------------------
def _choose_tiles(M, tm_cap):
    """Lane-tile (multiple of 128), number of grid steps, padded point count."""
    n_blocks = max(1, _cdiv(M, tm_cap))
    if M >= 256:
        n_blocks = max(n_blocks, 2)       # keep both v7x TensorCores busy
    tm = max(128, _round_up(_cdiv(M, n_blocks), 128))
    n_blocks = _cdiv(M, tm)
    return n_blocks, tm, n_blocks * tm


def pe_forward(x, n_freqs=N_FREQS, exp=PE_EXP, *, tm_cap=32768,
               out_dtype=jnp.float32):
    """x: (B, P, D) float32, D == len(n_freqs). Returns (B, P, 2*sum(n_freqs))."""
    B, P, D = x.shape
    n_freqs = tuple(int(n) for n in n_freqs)
    assert D == len(n_freqs)
    M = B * P
    F = 2 * sum(n_freqs)

    n_blocks, tm, M_pad = _choose_tiles(M, tm_cap)

    # Points on the lane axis for the kernel.  The input is only 12 B/point,
    # so leaving this transpose to XLA is cheap next to the 96 B/point output.
    xT = x.reshape(M, D).T
    if M_pad != M:
        xT = jnp.pad(xT, ((0, 0), (0, M_pad - M)))      # cos/sin of 0: sliced off

    freq_np, off_np = make_freq_off_np(n_freqs, exp)
    freq = jnp.asarray(freq_np)
    off = jnp.asarray(off_np)

    cparams = pltpu.CompilerParams(
        dimension_semantics=("parallel",),
        vmem_limit_bytes=48 * 1024 * 1024,   # headroom for tm=32768 on v7x (64 MiB VMEM)
    )
    in_specs = [
        pl.BlockSpec((D, tm), lambda i: (0, i)),
        pl.BlockSpec((F, 1), lambda i: (0, 0)),
        pl.BlockSpec((F, 1), lambda i: (0, 0)),
    ]

    def run(transpose_out):
        kern = functools.partial(_pe_kernel, n_freqs=n_freqs,
                                 transpose_out=transpose_out)
        if transpose_out:
            out_shape = jax.ShapeDtypeStruct((M_pad, F), out_dtype)
            out_spec = pl.BlockSpec((tm, F), lambda i: (i, 0))
        else:
            out_shape = jax.ShapeDtypeStruct((F, M_pad), out_dtype)
            out_spec = pl.BlockSpec((F, tm), lambda i: (0, i))
        return pl.pallas_call(
            kern,
            out_shape=out_shape,
            grid=(n_blocks,),
            in_specs=in_specs,
            out_specs=out_spec,
            compiler_params=cparams,
        )(xT, freq, off)

    try:
        out2d = run(True)            # (M_pad, F): no post-kernel HBM transpose
    except Exception:
        # Safety net only: known-good lane-major layout + XLA transpose
        # (costs an extra HBM round trip, used only if the in-kernel
        # transpose fails to lower on a given toolchain).
        out2d = run(False).T

    if M_pad != M:
        out2d = out2d[:M]
    return out2d.reshape(B, P, F)


# ----------------------------- pure-JAX reference ---------------------------
def pe_reference(x, n_freqs, exp):
    outs = []
    for d, n in enumerate(n_freqs):
        ar = np.arange(1, n + 1, dtype=np.float64)
        f = (np.pi * np.power(2.0, ar - 1.0)) if exp else (ar * np.pi / 2.0)
        f = jnp.asarray(f.astype(np.float32)).reshape(1, 1, n)
        phase = x[..., d:d + 1] * f                      # (B, P, n)
        outs.append(jnp.concatenate([jnp.cos(phase), jnp.sin(phase)], axis=-1))
    return jnp.concatenate(outs, axis=-1)


# --------------------------------- main -------------------------------------
if __name__ == "__main__":
    D = len(N_FREQS)

    # Small primary check (single grid step).
    x = jax.random.normal(jax.random.PRNGKey(0), (2, 16, D), dtype=jnp.float32)
    out = jax.block_until_ready(pe_forward(x, N_FREQS, PE_EXP))
    ref = pe_reference(x, N_FREQS, PE_EXP)
    np.testing.assert_allclose(np.asarray(out), np.asarray(ref),
                               rtol=2e-5, atol=2e-5)

    # Secondary check: multi-block grid + tail padding path.
    x2 = jax.random.normal(jax.random.PRNGKey(1), (4, 1000, D), dtype=jnp.float32)
    out2 = jax.block_until_ready(pe_forward(x2, N_FREQS, PE_EXP))
    ref2 = pe_reference(x2, N_FREQS, PE_EXP)
    np.testing.assert_allclose(np.asarray(out2), np.asarray(ref2),
                               rtol=2e-5, atol=2e-5)

    print("KERNEL_OK")
</pallas_src>

<mosaic_0001>
module attributes {stable_mosaic.version = 11 : i64} {
  func.func @_pe_kernel(%arg0: i32, %arg1: memref<3x128xf32, #tpu.memory_space<vmem>>, %arg2: memref<24x1xf32, #tpu.memory_space<vmem>>, %arg3: memref<24x1xf32, #tpu.memory_space<vmem>>, %arg4: memref<128x24xf32, #tpu.memory_space<vmem>>) attributes {dimension_semantics = [#tpu.dimension_semantics<parallel>], iteration_bounds = array<i64: 1>, scalar_prefetch = 0 : i64, scratch_operands = 0 : i64, tpu.core_type = #tpu.core_type<tc>, window_params = [{transform_indices = @transform_0, window_bounds = array<i64: 3, 128>}, {pipeline_mode = #tpu.pipeline_mode<synchronous>, transform_indices = @transform_1, window_bounds = array<i64: 24, 1>}, {pipeline_mode = #tpu.pipeline_mode<synchronous>, transform_indices = @transform_2, window_bounds = array<i64: 24, 1>}, {transform_indices = @transform_3, window_bounds = array<i64: 128, 24>}]} {
    %c0 = arith.constant 0 : index
    %c0_0 = arith.constant 0 : index
    %0 = vector.load %arg1[%c0, %c0_0] : memref<3x128xf32, #tpu.memory_space<vmem>>, vector<1x128xf32>
    %1 = vector.shape_cast %0 : vector<1x128xf32> to vector<1x128xf32>
    %2 = vector.broadcast %1 : vector<1x128xf32> to vector<8x128xf32>
    %c1 = arith.constant 1 : index
    %c0_1 = arith.constant 0 : index
    %3 = vector.load %arg1[%c1, %c0_1] : memref<3x128xf32, #tpu.memory_space<vmem>>, vector<1x128xf32>
    %4 = vector.shape_cast %3 : vector<1x128xf32> to vector<1x128xf32>
    %5 = vector.broadcast %4 : vector<1x128xf32> to vector<8x128xf32>
    %c2 = arith.constant 2 : index
    %c0_2 = arith.constant 0 : index
    %6 = vector.load %arg1[%c2, %c0_2] : memref<3x128xf32, #tpu.memory_space<vmem>>, vector<1x128xf32>
    %7 = vector.shape_cast %6 : vector<1x128xf32> to vector<1x128xf32>
    %8 = vector.broadcast %7 : vector<1x128xf32> to vector<8x128xf32>
    %9 = tpu.concatenate %2, %5, %8 in 0 : vector<8x128xf32>, vector<8x128xf32>, vector<8x128xf32> -> vector<24x128xf32>
    %c0_3 = arith.constant 0 : index
    %c0_4 = arith.constant 0 : index
    %10 = vector.load %arg2[%c0_3, %c0_4] : memref<24x1xf32, #tpu.memory_space<vmem>>, vector<24x1xf32>
    %11 = vector.broadcast %10 : vector<24x1xf32> to vector<24x128xf32>
    %12 = arith.mulf %9, %11 : vector<24x128xf32>
    %c0_5 = arith.constant 0 : index
    %c0_6 = arith.constant 0 : index
    %13 = vector.load %arg3[%c0_5, %c0_6] : memref<24x1xf32, #tpu.memory_space<vmem>>, vector<24x1xf32>
    %14 = vector.broadcast %13 : vector<24x1xf32> to vector<24x128xf32>
    %15 = arith.addf %12, %14 : vector<24x128xf32>
    %16 = math.cos %15 : vector<24x128xf32>
    %17 = tpu.transpose %16, [1, 0] : vector<24x128xf32> -> vector<128x24xf32>
    %c0_7 = arith.constant 0 : index
    %c0_8 = arith.constant 0 : index
    %18 = vector.load %arg4[%c0_7, %c0_8] : memref<128x24xf32, #tpu.memory_space<vmem>>, vector<128x24xf32>
    tpu.vector_store %arg4[%c0_7, %c0_8], %17 {strides = array<i32>} : memref<128x24xf32, #tpu.memory_space<vmem>>, vector<128x24xf32>,
    return
  }
  func.func @transform_0(%arg0: i32) -> (i32, i32) {
    %c0_i32 = arith.constant 0 : i32
    %c0_i32_0 = arith.constant 0 : i32
    return %c0_i32, %arg0 : i32, i32
  }
  func.func @transform_1(%arg0: i32) -> (i32, i32) {
    %c0_i32 = arith.constant 0 : i32
    %c0_i32_0 = arith.constant 0 : i32
    %c0_i32_1 = arith.constant 0 : i32
    return %c0_i32, %c0_i32_0 : i32, i32
  }
  func.func @transform_2(%arg0: i32) -> (i32, i32) {
    %c0_i32 = arith.constant 0 : i32
    %c0_i32_0 = arith.constant 0 : i32
    %c0_i32_1 = arith.constant 0 : i32
    return %c0_i32, %c0_i32_0 : i32, i32
  }
  func.func @transform_3(%arg0: i32) -> (i32, i32) {
    %c0_i32 = arith.constant 0 : i32
    %c0_i32_0 = arith.constant 0 : i32
    return %arg0, %c0_i32 : i32, i32
  }
}

module attributes {stable_mosaic.version = 11 : i64} {
  func.func @_pe_kernel(%arg0: i32, %arg1: memref<3x128xf32, #tpu.memory_space<vmem>>, %arg2: memref<24x1xf32, #tpu.memory_space<vmem>>, %arg3: memref<24x1xf32, #tpu.memory_space<vmem>>, %arg4: memref<24x128xf32, #tpu.memory_space<vmem>>) attributes {dimension_semantics = [#tpu.dimension_semantics<parallel>], iteration_bounds = array<i64: 1>, scalar_prefetch = 0 : i64, scratch_operands = 0 : i64, tpu.core_type = #tpu.core_type<tc>, window_params = [{transform_indices = @transform_0, window_bounds = array<i64: 3, 128>}, {pipeline_mode = #tpu.pipeline_mode<synchronous>, transform_indices = @transform_1, window_bounds = array<i64: 24, 1>}, {pipeline_mode = #tpu.pipeline_mode<synchronous>, transform_indices = @transform_2, window_bounds = array<i64: 24, 1>}, {transform_indices = @transform_3, window_bounds = array<i64: 24, 128>}]} {
    %c0 = arith.constant 0 : index
    %c0_0 = arith.constant 0 : index
    %0 = vector.load %arg1[%c0, %c0_0] : memref<3x128xf32, #tpu.memory_space<vmem>>, vector<1x128xf32>
    %1 = vector.shape_cast %0 : vector<1x128xf32> to vector<1x128xf32>
    %2 = vector.broadcast %1 : vector<1x128xf32> to vector<8x128xf32>
    %c1 = arith.constant 1 : index
    %c0_1 = arith.constant 0 : index
    %3 = vector.load %arg1[%c1, %c0_1] : memref<3x128xf32, #tpu.memory_space<vmem>>, vector<1x128xf32>
    %4 = vector.shape_cast %3 : vector<1x128xf32> to vector<1x128xf32>
    %5 = vector.broadcast %4 : vector<1x128xf32> to vector<8x128xf32>
    %c2 = arith.constant 2 : index
    %c0_2 = arith.constant 0 : index
    %6 = vector.load %arg1[%c2, %c0_2] : memref<3x128xf32, #tpu.memory_space<vmem>>, vector<1x128xf32>
    %7 = vector.shape_cast %6 : vector<1x128xf32> to vector<1x128xf32>
    %8 = vector.broadcast %7 : vector<1x128xf32> to vector<8x128xf32>
    %9 = tpu.concatenate %2, %5, %8 in 0 : vector<8x128xf32>, vector<8x128xf32>, vector<8x128xf32> -> vector<24x128xf32>
    %c0_3 = arith.constant 0 : index
    %c0_4 = arith.constant 0 : index
    %10 = vector.load %arg2[%c0_3, %c0_4] : memref<24x1xf32, #tpu.memory_space<vmem>>, vector<24x1xf32>
    %11 = vector.broadcast %10 : vector<24x1xf32> to vector<24x128xf32>
    %12 = arith.mulf %9, %11 : vector<24x128xf32>
    %c0_5 = arith.constant 0 : index
    %c0_6 = arith.constant 0 : index
    %13 = vector.load %arg3[%c0_5, %c0_6] : memref<24x1xf32, #tpu.memory_space<vmem>>, vector<24x1xf32>
    %14 = vector.broadcast %13 : vector<24x1xf32> to vector<24x128xf32>
    %15 = arith.addf %12, %14 : vector<24x128xf32>
    %16 = math.cos %15 : vector<24x128xf32>
    %c0_7 = arith.constant 0 : index
    %c0_8 = arith.constant 0 : index
    %17 = vector.load %arg4[%c0_7, %c0_8] : memref<24x128xf32, #tpu.memory_space<vmem>>, vector<24x128xf32>
    tpu.vector_store %arg4[%c0_7, %c0_8], %16 {strides = array<i32>} : memref<24x128xf32, #tpu.memory_space<vmem>>, vector<24x128xf32>,
    return
  }
  func.func @transform_0(%arg0: i32) -> (i32, i32) {
    %c0_i32 = arith.constant 0 : i32
    %c0_i32_0 = arith.constant 0 : i32
    return %c0_i32, %arg0 : i32, i32
  }
  func.func @transform_1(%arg0: i32) -> (i32, i32) {
    %c0_i32 = arith.constant 0 : i32
    %c0_i32_0 = arith.constant 0 : i32
    %c0_i32_1 = arith.constant 0 : i32
    return %c0_i32, %c0_i32_0 : i32, i32
  }
  func.func @transform_2(%arg0: i32) -> (i32, i32) {
    %c0_i32 = arith.constant 0 : i32
    %c0_i32_0 = arith.constant 0 : i32
    %c0_i32_1 = arith.constant 0 : i32
    return %c0_i32, %c0_i32_0 : i32, i32
  }
  func.func @transform_3(%arg0: i32) -> (i32, i32) {
    %c0_i32 = arith.constant 0 : i32
    %c0_i32_0 = arith.constant 0 : i32
    return %c0_i32, %arg0 : i32, i32
  }
}

</mosaic_0001>

<llo_original>
// kernel: tpu_custom_call.1
$region0: #{tpu_custom_call.1}
  #allocation0 [shape = 'u32[]', space=smem, size = 0x4, offset = 0x4, fixed_abs, tag = 'smem constant byte address 0x4 - core index']
  #allocation1 [shape = 'u32[144,128]{1,0:T(1,128)}', space=vmem, size = 0x12000, scoped, tag = 'internal scratch']
  %s0 = inlined_call_operand.vmem [shape: f32[3,128], index: 0, kind: input, shape index: {}]
  %s1 = inlined_call_operand.vmem [shape: f32[24,1], index: 1, kind: input, shape index: {}]
  %s2 = inlined_call_operand.vmem [shape: f32[24,1], index: 2, kind: input, shape index: {}]
  %s3 = inlined_call_operand.vmem [shape: f32[128,24], index: 3, kind: output, shape index: {}]
  %s4 = sld [smem:[#allocation0]]
  $region22: #{tpu_custom_call.1} parent=0
    _
  %s6 = ssub.s32 1, %s4
  %s7 = scalar_select 0, %s6, %s4
  // Predicated region
  $region2: #{tpu_custom_call.1} parent=0 // pred_check
    _
  $region3: #{tpu_custom_call.1} parent=0 // pred_check_branch
    %9 = sbr.rel (0) target = $region5
  $region4: #{tpu_custom_call.1} parent=0 // pred_region
    _
  $region5: #{tpu_custom_call.1} parent=0 // pred_fallthru
    _
  // Predicated region
  $region6: #{tpu_custom_call.1} parent=0 // pred_check
    _
  $region7: #{tpu_custom_call.1} parent=0 // pred_check_branch
    %11 = sbr.rel (0) target = $region9
  $region8: #{tpu_custom_call.1} parent=0 // pred_region
    _
  $region9: #{tpu_custom_call.1} parent=0 // pred_fallthru
    _
  // Predicated region
  $region10: #{tpu_custom_call.1} parent=0 // pred_check
    _
  $region11: #{tpu_custom_call.1} parent=0 // pred_check_branch
    %13 = sbr.rel (0) target = $region13
  $region12: #{tpu_custom_call.1} parent=0 // pred_region
    _
  $region13: #{tpu_custom_call.1} parent=0 // pred_fallthru
    _
  %v14 = vld [vmem:[%s0] sm:$0x1]
  %v15 = vlaneseq
  %v16 = vshrl.u32 %v15, 7
  %v17 = vsub.s32 0, %v16
  %v18 = vrot.slane %v14, %v17
  %v19 = vld [vmem:[%s0 + $0x1] sm:$0x1]
  %v20 = vlaneseq
  %v21 = vshrl.u32 %v20, 7
  %v22 = vsub.s32 0, %v21
  %v23 = vrot.slane %v19, %v22
  %v24 = vld [vmem:[%s0 + $0x2] sm:$0x1]
  %v25 = vlaneseq
  %v26 = vshrl.u32 %v25, 7
  %v27 = vsub.s32 0, %v26
  %v28 = vrot.slane %v24, %v27
  %v29 = vld [vmem:[%s1] sm:$0xff]
  %v30 = vld [vmem:[%s1 + $0x8] sm:$0xff]
  %v31 = vld [vmem:[%s1 + $0x10] sm:$0xff]
  %33 = vset.pattern.permute.xlu0 0
  %34 = vperm.xlu0 %33, %v29
  %v35 = vpop.permute.xlu0 %34
  %38 = vset.pattern.permute.xlu0 0
  %39 = vperm.xlu0 %38, %v30
  %v40 = vpop.permute.xlu0 %39
  %43 = vset.pattern.permute.xlu0 0
  %44 = vperm.xlu0 %43, %v31
  %v45 = vpop.permute.xlu0 %44
  %v47 = vmul.f32 %v18, %v35
  %v48 = vmul.f32 %v23, %v40
  %v49 = vmul.f32 %v28, %v45
  %v50 = vld [vmem:[%s2] sm:$0xff]
  %v51 = vld [vmem:[%s2 + $0x8] sm:$0xff]
  %v52 = vld [vmem:[%s2 + $0x10] sm:$0xff]
  %54 = vset.pattern.permute.xlu0 0
  %55 = vperm.xlu0 %54, %v50
  %v56 = vpop.permute.xlu0 %55
  %59 = vset.pattern.permute.xlu0 0
  %60 = vperm.xlu0 %59, %v51
  %v61 = vpop.permute.xlu0 %60
  %64 = vset.pattern.permute.xlu0 0
  %65 = vperm.xlu0 %64, %v52
  %v66 = vpop.permute.xlu0 %65
  %v68 = vadd.f32 %v47, %v56
  %v69 = vadd.f32 %v48, %v61
  %v70 = vadd.f32 %v49, %v66
  %v71 = vand.u32 2147483647, %v68
  %vm72 = vcmp.le.f32.partialorder %v71, 0.7853982
  %vm73 = vcmp.lt.s32.totalorder %v68, 0
  %v74 = vand.u32 %v68, 2139095040
  %v75 = vshrl.u32 %v74, 23
  %v76 = vsub.s32 %v75, 127
  %v77 = vand.u32 2147483647, %v68
  %v78 = vand.u32 %v77, 8388607
  %v79 = vor.u32 %v78, 8388608
  %v80 = vsub.s32 0, %v79
  %v81 = vadd.s32 %v76, 1
  %vm82 = vcmp.gt.s32.totalorder %v81, 0
  %v83 = vsel %vm82, %v81, 0
  %v84 = vshrl.u32 %v83, 5
  %v85 = vand.u32 %v83, 31
  %v86 = vsub.s32 32, %v85
  %v87 = vshrl.u32 683565275, %v86
  %v88 = vshll.u32 683565275, %v85
  %v89 = vshrl.u32 2475754826, %v86
  %v90 = vor.u32 %v88, %v89
  %v91 = vshll.u32 2475754826, %v85
  %v92 = vshrl.u32 2131351028, %v86
  %v93 = vor.u32 %v91, %v92
  %v94 = vshll.u32 2131351028, %v85
  %v95 = vshrl.u32 2102212464, %v86
  %v96 = vor.u32 %v94, %v95
  %v97 = vshll.u32 2102212464, %v85
  %v98 = vshrl.u32 920167782, %v86
  %v99 = vor.u32 %v97, %v98
  %v100 = vshll.u32 920167782, %v85
  %v101 = vshrl.u32 1326507024, %v86
  %v102 = vor.u32 %v100, %v101
  %vm103 = vcmp.lt.s32.totalorder %v84, 1
  %vm104 = vcmp.lt.s32.totalorder %v84, 2
  %vm105 = vcmp.lt.s32.totalorder %v84, 3
  %vm106 = vcmp.lt.s32.totalorder %v84, 4
  %v107 = vsel %vm103, %v87, %v90
  %v108 = vsel %vm106, %v96, 2102212464
  %v109 = vsel %vm105, %v93, %v108
  %v110 = vsel %vm104, %v107, %v109
  %v111 = vsel %vm103, %v90, %v93
  %v112 = vsel %vm106, %v99, 920167782
  %v113 = vsel %vm105, %v96, %v112
  %v114 = vsel %vm104, %v111, %v113
  %v115 = vsel %vm103, %v93, %v96
  %v116 = vsel %vm106, %v102, 1326507024
  %v117 = vsel %vm105, %v99, %v116
  %v118 = vsel %vm104, %v115, %v117
  %v119 = vshll.u32 %v79, 8
  %v120 = vmul.u32.u64.compose %v119, %v118
  %v121 = vextract.low.u32 %v120
  %v122 = vextract.high.u32 %v120
  %v123 = vmul.u32.u64.compose %v119, %v114
  %v124 = vextract.low.u32 %v123
  %v125 = vextract.high.u32 %v123
  %v126 = vmul.u32 %v119, %v110
  %v127 = vadd.s32 %v122, %v124
  %vm128 = vc.u32 %v122, %v124
  %v129 = vadd.s32 %v125, 1
  %v130 = vsel %vm128, %v129, %v125
  %v131 = vadd.s32 %v126, %v130
  %v132 = vadd.s32 %v131, 536870912
  %v133 = vshrl.u32 %v132, 30
  %v134 = vshll.u32 %v133, 30
  %v135 = vsub.s32 %v131, %v134
  %vm136 = vcmp.lt.s32.totalorder %v135, 0
  %v137 = vsub.s32 0, %v135
  %v138 = vsel %vm136, %v137, %v135
  %v139 = vclz %v138
  %v140 = vsub.s32 %v139, 2
  %vm141 = vcmp.gt.s32.totalorder 0, %v140
  %v142 = vsel %vm141, 0, %v140
  %v143 = vsub.s32 32, %v142
  %v144 = vshll.u32 %v135, %v142
  %v145 = vshrl.u32 %v127, %v143
  %v146 = vor.u32 %v144, %v145
  %v147 = vsub.s32 4294967266, %v142
  %v148 = vadd.s32 %v147, 127
  %v149 = vshll.u32 %v148, 23
  %v150 = vor.u32 4788187, %v149
  %v151 = vand.u32 2147483647, %v150
  %v153 = vcvt.s32.f32 %v146
  %v154 = vmul.f32 %v153, %v151
  %v155 = vxor.u32 %v154, 2147483648
  %v156 = vsel %vm73, %v155, %v154
  %v157 = vsub.s32 4, %v133
  %v158 = vsel %vm73, %v157, %v133
  %v159 = vsel %vm72, %v68, %v156
  %v160 = vsel %vm72, 0, %v158
  %v161 = vcosq.f32.pop %v159
  %v162 = vsinq.f32.pop %v159
  %vm163 = vweird.f32 %v68
  %v164 = vand.u32 %v160, 3
  %vm165 = vcmp.lt.s32.totalorder %v164, 2
  %vm166 = vcmp.eq.s32.totalorder %v164, 0
  %v167 = vxor.u32 %v162, 2147483648
  %v168 = vsel %vm166, %v161, %v167
  %vm169 = vcmp.eq.s32.totalorder %v164, 2
  %v170 = vxor.u32 %v161, 2147483648
  %v171 = vsel %vm169, %v170, %v162
  %v172 = vsel %vm165, %v168, %v171
  %v173 = vsel %vm163, nan, %v172
  %v174 = vand.u32 2147483647, %v69
  %vm175 = vcmp.le.f32.partialorder %v174, 0.7853982
  %vm176 = vcmp.lt.s32.totalorder %v69, 0
  %v177 = vand.u32 %v69, 2139095040
  %v178 = vshrl.u32 %v177, 23
  %v179 = vsub.s32 %v178, 127
  %v180 = vand.u32 2147483647, %v69
  %v181 = vand.u32 %v180, 8388607
  %v182 = vor.u32 %v181, 8388608
  %v183 = vsub.s32 0, %v182
  %v184 = vadd.s32 %v179, 1
  %vm185 = vcmp.gt.s32.totalorder %v184, 0
  %v186 = vsel %vm185, %v184, 0
  %v187 = vshrl.u32 %v186, 5
  %v188 = vand.u32 %v186, 31
  %v189 = vsub.s32 32, %v188
  %v190 = vshrl.u32 683565275, %v189
  %v191 = vshll.u32 683565275, %v188
  %v192 = vshrl.u32 2475754826, %v189
  %v193 = vor.u32 %v191, %v192
  %v194 = vshll.u32 2475754826, %v188
  %v195 = vshrl.u32 2131351028, %v189
  %v196 = vor.u32 %v194, %v195
  %v197 = vshll.u32 2131351028, %v188
  %v198 = vshrl.u32 2102212464, %v189
  %v199 = vor.u32 %v197, %v198
  %v200 = vshll.u32 2102212464, %v188
  %v201 = vshrl.u32 920167782, %v189
  %v202 = vor.u32 %v200, %v201
  %v203 = vshll.u32 920167782, %v188
  %v204 = vshrl.u32 1326507024, %v189
  %v205 = vor.u32 %v203, %v204
  %vm206 = vcmp.lt.s32.totalorder %v187, 1
  %vm207 = vcmp.lt.s32.totalorder %v187, 2
  %vm208 = vcmp.lt.s32.totalorder %v187, 3
  %vm209 = vcmp.lt.s32.totalorder %v187, 4
  %v210 = vsel %vm206, %v190, %v193
  %v211 = vsel %vm209, %v199, 2102212464
  %v212 = vsel %vm208, %v196, %v211
  %v213 = vsel %vm207, %v210, %v212
  %v214 = vsel %vm206, %v193, %v196
  %v215 = vsel %vm209, %v202, 920167782
  %v216 = vsel %vm208, %v199, %v215
  %v217 = vsel %vm207, %v214, %v216
  %v218 = vsel %vm206, %v196, %v199
  %v219 = vsel %vm209, %v205, 1326507024
  %v220 = vsel %vm208, %v202, %v219
  %v221 = vsel %vm207, %v218, %v220
  %v222 = vshll.u32 %v182, 8
  %v223 = vmul.u32.u64.compose %v222, %v221
  %v224 = vextract.low.u32 %v223
  %v225 = vextract.high.u32 %v223
  %v226 = vmul.u32.u64.compose %v222, %v217
  %v227 = vextract.low.u32 %v226
  %v228 = vextract.high.u32 %v226
  %v229 = vmul.u32 %v222, %v213
  %v230 = vadd.s32 %v225, %v227
  %vm231 = vc.u32 %v225, %v227
  %v232 = vadd.s32 %v228, 1
  %v233 = vsel %vm231, %v232, %v228
  %v234 = vadd.s32 %v229, %v233
  %v235 = vadd.s32 %v234, 536870912
  %v236 = vshrl.u32 %v235, 30
  %v237 = vshll.u32 %v236, 30
  %v238 = vsub.s32 %v234, %v237
  %vm239 = vcmp.lt.s32.totalorder %v238, 0
  %v240 = vsub.s32 0, %v238
  %v241 = vsel %vm239, %v240, %v238
  %v242 = vclz %v241
  %v243 = vsub.s32 %v242, 2
  %vm244 = vcmp.gt.s32.totalorder 0, %v243
  %v245 = vsel %vm244, 0, %v243
  %v246 = vsub.s32 32, %v245
  %v247 = vshll.u32 %v238, %v245
  %v248 = vshrl.u32 %v230, %v246
  %v249 = vor.u32 %v247, %v248
  %v250 = vsub.s32 4294967266, %v245
  %v251 = vadd.s32 %v250, 127
  %v252 = vshll.u32 %v251, 23
  %v253 = vor.u32 4788187, %v252
  %v254 = vand.u32 2147483647, %v253
  %v256 = vcvt.s32.f32 %v249
  %v257 = vmul.f32 %v256, %v254
  %v258 = vxor.u32 %v257, 2147483648
  %v259 = vsel %vm176, %v258, %v257
  %v260 = vsub.s32 4, %v236
  %v261 = vsel %vm176, %v260, %v236
  %v262 = vsel %vm175, %v69, %v259
  %v263 = vsel %vm175, 0, %v261
  %v264 = vcosq.f32.pop %v262
  %v265 = vsinq.f32.pop %v262
  %vm266 = vweird.f32 %v69
  %v267 = vand.u32 %v263, 3
  %vm268 = vcmp.lt.s32.totalorder %v267, 2
  %vm269 = vcmp.eq.s32.totalorder %v267, 0
  %v270 = vxor.u32 %v265, 2147483648
  %v271 = vsel %vm269, %v264, %v270
  %vm272 = vcmp.eq.s32.totalorder %v267, 2
  %v273 = vxor.u32 %v264, 2147483648
  %v274 = vsel %vm272, %v273, %v265
  %v275 = vsel %vm268, %v271, %v274
  %v276 = vsel %vm266, nan, %v275
  %v277 = vand.u32 2147483647, %v70
  %vm278 = vcmp.le.f32.partialorder %v277, 0.7853982
  %vm279 = vcmp.lt.s32.totalorder %v70, 0
  %v280 = vand.u32 %v70, 2139095040
  %v281 = vshrl.u32 %v280, 23
  %v282 = vsub.s32 %v281, 127
  %v283 = vand.u32 2147483647, %v70
  %v284 = vand.u32 %v283, 8388607
  %v285 = vor.u32 %v284, 8388608
  %v286 = vsub.s32 0, %v285
  %v287 = vadd.s32 %v282, 1
  %vm288 = vcmp.gt.s32.totalorder %v287, 0
  %v289 = vsel %vm288, %v287, 0
  %v290 = vshrl.u32 %v289, 5
  %v291 = vand.u32 %v289, 31
  %v292 = vsub.s32 32, %v291
  %v293 = vshrl.u32 683565275, %v292
  %v294 = vshll.u32 683565275, %v291
  %v295 = vshrl.u32 2475754826, %v292
  %v296 = vor.u32 %v294, %v295
  %v297 = vshll.u32 2475754826, %v291
  %v298 = vshrl.u32 2131351028, %v292
  %v299 = vor.u32 %v297, %v298
  %v300 = vshll.u32 2131351028, %v291
  %v301 = vshrl.u32 2102212464, %v292
  %v302 = vor.u32 %v300, %v301
  %v303 = vshll.u32 2102212464, %v291
  %v304 = vshrl.u32 920167782, %v292
  %v305 = vor.u32 %v303, %v304
  %v306 = vshll.u32 920167782, %v291
  %v307 = vshrl.u32 1326507024, %v292
  %v308 = vor.u32 %v306, %v307
  %vm309 = vcmp.lt.s32.totalorder %v290, 1
  %vm310 = vcmp.lt.s32.totalorder %v290, 2
  %vm311 = vcmp.lt.s32.totalorder %v290, 3
  %vm312 = vcmp.lt.s32.totalorder %v290, 4
  %v313 = vsel %vm309, %v293, %v296
  %v314 = vsel %vm312, %v302, 2102212464
  %v315 = vsel %vm311, %v299, %v314
  %v316 = vsel %vm310, %v313, %v315
  %v317 = vsel %vm309, %v296, %v299
  %v318 = vsel %vm312, %v305, 920167782
  %v319 = vsel %vm311, %v302, %v318
  %v320 = vsel %vm310, %v317, %v319
  %v321 = vsel %vm309, %v299, %v302
  %v322 = vsel %vm312, %v308, 1326507024
  %v323 = vsel %vm311, %v305, %v322
  %v324 = vsel %vm310, %v321, %v323
  %v325 = vshll.u32 %v285, 8
  %v326 = vmul.u32.u64.compose %v325, %v324
  %v327 = vextract.low.u32 %v326
  %v328 = vextract.high.u32 %v326
  %v329 = vmul.u32.u64.compose %v325, %v320
  %v330 = vextract.low.u32 %v329
  %v331 = vextract.high.u32 %v329
  %v332 = vmul.u32 %v325, %v316
  %v333 = vadd.s32 %v328, %v330
  %vm334 = vc.u32 %v328, %v330
  %v335 = vadd.s32 %v331, 1
  %v336 = vsel %vm334, %v335, %v331
  %v337 = vadd.s32 %v332, %v336
  %v338 = vadd.s32 %v337, 536870912
  %v339 = vshrl.u32 %v338, 30
  %v340 = vshll.u32 %v339, 30
  %v341 = vsub.s32 %v337, %v340
  %vm342 = vcmp.lt.s32.totalorder %v341, 0
  %v343 = vsub.s32 0, %v341
  %v344 = vsel %vm342, %v343, %v341
  %v345 = vclz %v344
  %v346 = vsub.s32 %v345, 2
  %vm347 = vcmp.gt.s32.totalorder 0, %v346
  %v348 = vsel %vm347, 0, %v346
  %v349 = vsub.s32 32, %v348
  %v350 = vshll.u32 %v341, %v348
  %v351 = vshrl.u32 %v333, %v349
  %v352 = vor.u32 %v350, %v351
  %v353 = vsub.s32 4294967266, %v348
  %v354 = vadd.s32 %v353, 127
  %v355 = vshll.u32 %v354, 23
  %v356 = vor.u32 4788187, %v355
  %v357 = vand.u32 2147483647, %v356
  %v359 = vcvt.s32.f32 %v352
  %v360 = vmul.f32 %v359, %v357
  %v361 = vxor.u32 %v360, 2147483648
  %v362 = vsel %vm279, %v361, %v360
  %v363 = vsub.s32 4, %v339
  %v364 = vsel %vm279, %v363, %v339
  %v365 = vsel %vm278, %v70, %v362
  %v366 = vsel %vm278, 0, %v364
  %v367 = vcosq.f32.pop %v365
  %v368 = vsinq.f32.pop %v365
  %vm369 = vweird.f32 %v70
  %v370 = vand.u32 %v366, 3
  %vm371 = vcmp.lt.s32.totalorder %v370, 2
  %vm372 = vcmp.eq.s32.totalorder %v370, 0
  %v373 = vxor.u32 %v368, 2147483648
  %v374 = vsel %vm372, %v367, %v373
  %vm375 = vcmp.eq.s32.totalorder %v370, 2
  %v376 = vxor.u32 %v367, 2147483648
  %v377 = vsel %vm375, %v376, %v368
  %v378 = vsel %vm371, %v374, %v377
  %v379 = vsel %vm369, nan, %v378
  %380 = vxpose.xlu0.b32.start [1/16] %v173, 128
  %381 = vxpose.xlu0.b32.cont [2/16] %v276, 128
  %382 = vxpose.xlu0.b32.cont [3/16] %v379, 128
  %383 = vxpose.xlu0.b32.cont [4/16] 0.0, 128
  %384 = vxpose.xlu0.b32.cont [5/16] 0.0, 128
  %385 = vxpose.xlu0.b32.cont [6/16] 0.0, 128
  %386 = vxpose.xlu0.b32.cont [7/16] 0.0, 128
  %387 = vxpose.xlu0.b32.cont [8/16] 0.0, 128
  %388 = vxpose.xlu0.b32.cont [9/16] 0.0, 128
  %389 = vxpose.xlu0.b32.cont [10/16] 0.0, 128
  %390 = vxpose.xlu0.b32.cont [11/16] 0.0, 128
  %391 = vxpose.xlu0.b32.cont [12/16] 0.0, 128
  %392 = vxpose.xlu0.b32.cont [13/16] 0.0, 128
  %393 = vxpose.xlu0.b32.cont [14/16] 0.0, 128
  %394 = vxpose.xlu0.b32.cont [15/16] 0.0, 128
  %395 = vxpose.xlu0.b32.end [16/16] 0.0, 128
  %v396 = vpop.trf.xlu0
  %v397 = vpop.trf.xlu0
  %v398 = vpop.trf.xlu0
  %v399 = vpop.trf.xlu0
  %v400 = vpop.trf.xlu0
  %v401 = vpop.trf.xlu0
  %v402 = vpop.trf.xlu0
  %v403 = vpop.trf.xlu0
  %v404 = vpop.trf.xlu0
  %v405 = vpop.trf.xlu0
  %v406 = vpop.trf.xlu0
  %v407 = vpop.trf.xlu0
  %v408 = vpop.trf.xlu0
  %v409 = vpop.trf.xlu0
  %v410 = vpop.trf.xlu0
  %v411 = vpop.trf.xlu0
  %vm412 = vcmask 195584
  %413 = vst.msk [vmem:[%s3] sm:$0xff] %vm412, %v396
  %414 = vst.msk [vmem:[%s3 + $0x8] sm:$0xff] %vm412, %v397
  %415 = vst.msk [vmem:[%s3 + $0x10] sm:$0xff] %vm412, %v398
  %416 = vst.msk [vmem:[%s3 + $0x18] sm:$0xff] %vm412, %v399
  %417 = vst.msk [vmem:[%s3 + $0x20] sm:$0xff] %vm412, %v400
  %418 = vst.msk [vmem:[%s3 + $0x28] sm:$0xff] %vm412, %v401
  %419 = vst.msk [vmem:[%s3 + $0x30] sm:$0xff] %vm412, %v402
  %420 = vst.msk [vmem:[%s3 + $0x38] sm:$0xff] %vm412, %v403
  %421 = vst.msk [vmem:[%s3 + $0x40] sm:$0xff] %vm412, %v404
  %422 = vst.msk [vmem:[%s3 + $0x48] sm:$0xff] %vm412, %v405
  %423 = vst.msk [vmem:[%s3 + $0x50] sm:$0xff] %vm412, %v406
  %424 = vst.msk [vmem:[%s3 + $0x58] sm:$0xff] %vm412, %v407
  %425 = vst.msk [vmem:[%s3 + $0x60] sm:$0xff] %vm412, %v408
  %426 = vst.msk [vmem:[%s3 + $0x68] sm:$0xff] %vm412, %v409
  %427 = vst.msk [vmem:[%s3 + $0x70] sm:$0xff] %vm412, %v410
  %428 = vst.msk [vmem:[%s3 + $0x78] sm:$0xff] %vm412, %v411
  // Predicated region
  $region14: #{tpu_custom_call.1} parent=0 // pred_check
    _
  $region15: #{tpu_custom_call.1} parent=0 // pred_check_branch
    %430 = sbr.rel (0) target = $region17
  $region16: #{tpu_custom_call.1} parent=0 // pred_region
    _
  $region17: #{tpu_custom_call.1} parent=0 // pred_fallthru
    _
  // Predicated region
  $region18: #{tpu_custom_call.1} parent=0 // pred_check
    _
  $region19: #{tpu_custom_call.1} parent=0 // pred_check_branch
    %432 = sbr.rel (0) target = $region21
  $region20: #{tpu_custom_call.1} parent=0 // pred_region
    _
  $region21: #{tpu_custom_call.1} parent=0 // pred_fallthru
    _

// kernel: tpu_custom_call.1
$region0: #{tpu_custom_call.1}
  #allocation0 [shape = 'u32[]', space=smem, size = 0x4, offset = 0x4, fixed_abs, tag = 'smem constant byte address 0x4 - core index']
  #allocation1 [shape = 'u32[144,128]{1,0:T(1,128)}', space=vmem, size = 0x12000, scoped, tag = 'internal scratch']
  %s0 = inlined_call_operand.vmem [shape: f32[3,128], index: 0, kind: input, shape index: {}]
  %s1 = inlined_call_operand.vmem [shape: f32[24,1], index: 1, kind: input, shape index: {}]
  %s2 = inlined_call_operand.vmem [shape: f32[24,1], index: 2, kind: input, shape index: {}]
  %s3 = inlined_call_operand.hbm [shape: f32[24,128], index: 3, kind: output, shape index: {}]
  %s4 = sld [smem:[#allocation0]]
  $region22: #{tpu_custom_call.1} parent=0
    _
  %s6 = ssub.s32 1, %s4
  %s7 = scalar_select 0, %s6, %s4
  $region1: #{tpu_custom_call.1} parent=0
    #allocation2 [shape = 'u8[12288]{0}', space=vmem, size = 0x3000, scoped, tag = 'output window, operand 0, single buffered']
    #allocation3 [shape = 's32[1]{0}', space=sflag, size = 0x4, scoped, tag = 'scoped memory for tpu_custom_call.1']
    %8 = vsyncpa [#allocation3], 0
    // Predicated region
    $region2: #{tpu_custom_call.1} parent=1 // pred_check
      _
    $region3: #{tpu_custom_call.1} parent=1 // pred_check_branch
      %10 = sbr.rel (0) target = $region5
    $region4: #{tpu_custom_call.1} parent=1 // pred_region
      _
    $region5: #{tpu_custom_call.1} parent=1 // pred_fallthru
      _
    // Predicated region
    $region6: #{tpu_custom_call.1} parent=1 // pred_check
      _
    $region7: #{tpu_custom_call.1} parent=1 // pred_check_branch
      %12 = sbr.rel (0) target = $region9
    $region8: #{tpu_custom_call.1} parent=1 // pred_region
      _
    $region9: #{tpu_custom_call.1} parent=1 // pred_fallthru
      _
    // Predicated region
    $region10: #{tpu_custom_call.1} parent=1 // pred_check
      _
    $region11: #{tpu_custom_call.1} parent=1 // pred_check_branch
      %14 = sbr.rel (0) target = $region13
    $region12: #{tpu_custom_call.1} parent=1 // pred_region
      _
    $region13: #{tpu_custom_call.1} parent=1 // pred_fallthru
      _
    %v15 = vld [vmem:[%s0] sm:$0x1]
    %v16 = vlaneseq
    %v17 = vshrl.u32 %v16, 7
    %v18 = vsub.s32 0, %v17
    %v19 = vrot.slane %v15, %v18
    %v20 = vld [vmem:[%s0 + $0x1] sm:$0x1]
    %v21 = vlaneseq
    %v22 = vshrl.u32 %v21, 7
    %v23 = vsub.s32 0, %v22
    %v24 = vrot.slane %v20, %v23
    %v25 = vld [vmem:[%s0 + $0x2] sm:$0x1]
    %v26 = vlaneseq
    %v27 = vshrl.u32 %v26, 7
    %v28 = vsub.s32 0, %v27
    %v29 = vrot.slane %v25, %v28
    %v30 = vld [vmem:[%s1] sm:$0xff]
    %v31 = vld [vmem:[%s1 + $0x8] sm:$0xff]
    %v32 = vld [vmem:[%s1 + $0x10] sm:$0xff]
    %34 = vset.pattern.permute.xlu0 0
    %35 = vperm.xlu0 %34, %v30
    %v36 = vpop.permute.xlu0 %35
    %39 = vset.pattern.permute.xlu0 0
    %40 = vperm.xlu0 %39, %v31
    %v41 = vpop.permute.xlu0 %40
    %44 = vset.pattern.permute.xlu0 0
    %45 = vperm.xlu0 %44, %v32
    %v46 = vpop.permute.xlu0 %45
    %v48 = vmul.f32 %v19, %v36
    %v49 = vmul.f32 %v24, %v41
    %v50 = vmul.f32 %v29, %v46
    %v51 = vld [vmem:[%s2] sm:$0xff]
    %v52 = vld [vmem:[%s2 + $0x8] sm:$0xff]
    %v53 = vld [vmem:[%s2 + $0x10] sm:$0xff]
    %55 = vset.pattern.permute.xlu0 0
    %56 = vperm.xlu0 %55, %v51
    %v57 = vpop.permute.xlu0 %56
    %60 = vset.pattern.permute.xlu0 0
    %61 = vperm.xlu0 %60, %v52
    %v62 = vpop.permute.xlu0 %61
    %65 = vset.pattern.permute.xlu0 0
    %66 = vperm.xlu0 %65, %v53
    %v67 = vpop.permute.xlu0 %66
    %v69 = vadd.f32 %v48, %v57
    %v70 = vadd.f32 %v49, %v62
    %v71 = vadd.f32 %v50, %v67
    %v72 = vand.u32 2147483647, %v69
    %vm73 = vcmp.le.f32.partialorder %v72, 0.7853982
    %vm74 = vcmp.lt.s32.totalorder %v69, 0
    %v75 = vand.u32 %v69, 2139095040
    %v76 = vshrl.u32 %v75, 23
    %v77 = vsub.s32 %v76, 127
    %v78 = vand.u32 2147483647, %v69
    %v79 = vand.u32 %v78, 8388607
    %v80 = vor.u32 %v79, 8388608
    %v81 = vsub.s32 0, %v80
    %v82 = vadd.s32 %v77, 1
    %vm83 = vcmp.gt.s32.totalorder %v82, 0
    %v84 = vsel %vm83, %v82, 0
    %v85 = vshrl.u32 %v84, 5
    %v86 = vand.u32 %v84, 31
    %v87 = vsub.s32 32, %v86
    %v88 = vshrl.u32 683565275, %v87
    %v89 = vshll.u32 683565275, %v86
    %v90 = vshrl.u32 2475754826, %v87
    %v91 = vor.u32 %v89, %v90
    %v92 = vshll.u32 2475754826, %v86
    %v93 = vshrl.u32 2131351028, %v87
    %v94 = vor.u32 %v92, %v93
    %v95 = vshll.u32 2131351028, %v86
    %v96 = vshrl.u32 2102212464, %v87
    %v97 = vor.u32 %v95, %v96
    %v98 = vshll.u32 2102212464, %v86
    %v99 = vshrl.u32 920167782, %v87
    %v100 = vor.u32 %v98, %v99
    %v101 = vshll.u32 920167782, %v86
    %v102 = vshrl.u32 1326507024, %v87
    %v103 = vor.u32 %v101, %v102
    %vm104 = vcmp.lt.s32.totalorder %v85, 1
    %vm105 = vcmp.lt.s32.totalorder %v85, 2
    %vm106 = vcmp.lt.s32.totalorder %v85, 3
    %vm107 = vcmp.lt.s32.totalorder %v85, 4
    %v108 = vsel %vm104, %v88, %v91
    %v109 = vsel %vm107, %v97, 2102212464
    %v110 = vsel %vm106, %v94, %v109
    %v111 = vsel %vm105, %v108, %v110
    %v112 = vsel %vm104, %v91, %v94
    %v113 = vsel %vm107, %v100, 920167782
    %v114 = vsel %vm106, %v97, %v113
    %v115 = vsel %vm105, %v112, %v114
    %v116 = vsel %vm104, %v94, %v97
    %v117 = vsel %vm107, %v103, 1326507024
    %v118 = vsel %vm106, %v100, %v117
    %v119 = vsel %vm105, %v116, %v118
    %v120 = vshll.u32 %v80, 8
    %v121 = vmul.u32.u64.compose %v120, %v119
    %v122 = vextract.low.u32 %v121
    %v123 = vextract.high.u32 %v121
    %v124 = vmul.u32.u64.compose %v120, %v115
    %v125 = vextract.low.u32 %v124
    %v126 = vextract.high.u32 %v124
    %v127 = vmul.u32 %v120, %v111
    %v128 = vadd.s32 %v123, %v125
    %vm129 = vc.u32 %v123, %v125
    %v130 = vadd.s32 %v126, 1
    %v131 = vsel %vm129, %v130, %v126
    %v132 = vadd.s32 %v127, %v131
    %v133 = vadd.s32 %v132, 536870912
    %v134 = vshrl.u32 %v133, 30
    %v135 = vshll.u32 %v134, 30
    %v136 = vsub.s32 %v132, %v135
    %vm137 = vcmp.lt.s32.totalorder %v136, 0
    %v138 = vsub.s32 0, %v136
    %v139 = vsel %vm137, %v138, %v136
    %v140 = vclz %v139
    %v141 = vsub.s32 %v140, 2
    %vm142 = vcmp.gt.s32.totalorder 0, %v141
    %v143 = vsel %vm142, 0, %v141
    %v144 = vsub.s32 32, %v143
    %v145 = vshll.u32 %v136, %v143
    %v146 = vshrl.u32 %v128, %v144
    %v147 = vor.u32 %v145, %v146
    %v148 = vsub.s32 4294967266, %v143
    %v149 = vadd.s32 %v148, 127
    %v150 = vshll.u32 %v149, 23
    %v151 = vor.u32 4788187, %v150
    %v152 = vand.u32 2147483647, %v151
    %v154 = vcvt.s32.f32 %v147
    %v155 = vmul.f32 %v154, %v152
    %v156 = vxor.u32 %v155, 2147483648
    %v157 = vsel %vm74, %v156, %v155
    %v158 = vsub.s32 4, %v134
    %v159 = vsel %vm74, %v158, %v134
    %v160 = vsel %vm73, %v69, %v157
    %v161 = vsel %vm73, 0, %v159
    %v162 = vcosq.f32.pop %v160
    %v163 = vsinq.f32.pop %v160
    %vm164 = vweird.f32 %v69
    %v165 = vand.u32 %v161, 3
    %vm166 = vcmp.lt.s32.totalorder %v165, 2
    %vm167 = vcmp.eq.s32.totalorder %v165, 0
    %v168 = vxor.u32 %v163, 2147483648
    %v169 = vsel %vm167, %v162, %v168
    %vm170 = vcmp.eq.s32.totalorder %v165, 2
    %v171 = vxor.u32 %v162, 2147483648
    %v172 = vsel %vm170, %v171, %v163
    %v173 = vsel %vm166, %v169, %v172
    %v174 = vsel %vm164, nan, %v173
    %v175 = vand.u32 2147483647, %v70
    %vm176 = vcmp.le.f32.partialorder %v175, 0.7853982
    %vm177 = vcmp.lt.s32.totalorder %v70, 0
    %v178 = vand.u32 %v70, 2139095040
    %v179 = vshrl.u32 %v178, 23
    %v180 = vsub.s32 %v179, 127
    %v181 = vand.u32 2147483647, %v70
    %v182 = vand.u32 %v181, 8388607
    %v183 = vor.u32 %v182, 8388608
    %v184 = vsub.s32 0, %v183
    %v185 = vadd.s32 %v180, 1
    %vm186 = vcmp.gt.s32.totalorder %v185, 0
    %v187 = vsel %vm186, %v185, 0
    %v188 = vshrl.u32 %v187, 5
    %v189 = vand.u32 %v187, 31
    %v190 = vsub.s32 32, %v189
    %v191 = vshrl.u32 683565275, %v190
    %v192 = vshll.u32 683565275, %v189
    %v193 = vshrl.u32 2475754826, %v190
    %v194 = vor.u32 %v192, %v193
    %v195 = vshll.u32 2475754826, %v189
    %v196 = vshrl.u32 2131351028, %v190
    %v197 = vor.u32 %v195, %v196
    %v198 = vshll.u32 2131351028, %v189
    %v199 = vshrl.u32 2102212464, %v190
    %v200 = vor.u32 %v198, %v199
    %v201 = vshll.u32 2102212464, %v189
    %v202 = vshrl.u32 920167782, %v190
    %v203 = vor.u32 %v201, %v202
    %v204 = vshll.u32 920167782, %v189
    %v205 = vshrl.u32 1326507024, %v190
    %v206 = vor.u32 %v204, %v205
    %vm207 = vcmp.lt.s32.totalorder %v188, 1
    %vm208 = vcmp.lt.s32.totalorder %v188, 2
    %vm209 = vcmp.lt.s32.totalorder %v188, 3
    %vm210 = vcmp.lt.s32.totalorder %v188, 4
    %v211 = vsel %vm207, %v191, %v194
    %v212 = vsel %vm210, %v200, 2102212464
    %v213 = vsel %vm209, %v197, %v212
    %v214 = vsel %vm208, %v211, %v213
    %v215 = vsel %vm207, %v194, %v197
    %v216 = vsel %vm210, %v203, 920167782
    %v217 = vsel %vm209, %v200, %v216
    %v218 = vsel %vm208, %v215, %v217
    %v219 = vsel %vm207, %v197, %v200
    %v220 = vsel %vm210, %v206, 1326507024
    %v221 = vsel %vm209, %v203, %v220
    %v222 = vsel %vm208, %v219, %v221
    %v223 = vshll.u32 %v183, 8
    %v224 = vmul.u32.u64.compose %v223, %v222
    %v225 = vextract.low.u32 %v224
    %v226 = vextract.high.u32 %v224
    %v227 = vmul.u32.u64.compose %v223, %v218
    %v228 = vextract.low.u32 %v227
    %v229 = vextract.high.u32 %v227
    %v230 = vmul.u32 %v223, %v214
    %v231 = vadd.s32 %v226, %v228
    %vm232 = vc.u32 %v226, %v228
    %v233 = vadd.s32 %v229, 1
    %v234 = vsel %vm232, %v233, %v229
    %v235 = vadd.s32 %v230, %v234
    %v236 = vadd.s32 %v235, 536870912
    %v237 = vshrl.u32 %v236, 30
    %v238 = vshll.u32 %v237, 30
    %v239 = vsub.s32 %v235, %v238
    %vm240 = vcmp.lt.s32.totalorder %v239, 0
    %v241 = vsub.s32 0, %v239
    %v242 = vsel %vm240, %v241, %v239
    %v243 = vclz %v242
    %v244 = vsub.s32 %v243, 2
    %vm245 = vcmp.gt.s32.totalorder 0, %v244
    %v246 = vsel %vm245, 0, %v244
    %v247 = vsub.s32 32, %v246
    %v248 = vshll.u32 %v239, %v246
    %v249 = vshrl.u32 %v231, %v247
    %v250 = vor.u32 %v248, %v249
    %v251 = vsub.s32 4294967266, %v246
    %v252 = vadd.s32 %v251, 127
    %v253 = vshll.u32 %v252, 23
    %v254 = vor.u32 4788187, %v253
    %v255 = vand.u32 2147483647, %v254
    %v257 = vcvt.s32.f32 %v250
    %v258 = vmul.f32 %v257, %v255
    %v259 = vxor.u32 %v258, 2147483648
    %v260 = vsel %vm177, %v259, %v258
    %v261 = vsub.s32 4, %v237
    %v262 = vsel %vm177, %v261, %v237
    %v263 = vsel %vm176, %v70, %v260
    %v264 = vsel %vm176, 0, %v262
    %v265 = vcosq.f32.pop %v263
    %v266 = vsinq.f32.pop %v263
    %vm267 = vweird.f32 %v70
    %v268 = vand.u32 %v264, 3
    %vm269 = vcmp.lt.s32.totalorder %v268, 2
    %vm270 = vcmp.eq.s32.totalorder %v268, 0
    %v271 = vxor.u32 %v266, 2147483648
    %v272 = vsel %vm270, %v265, %v271
    %vm273 = vcmp.eq.s32.totalorder %v268, 2
    %v274 = vxor.u32 %v265, 2147483648
    %v275 = vsel %vm273, %v274, %v266
    %v276 = vsel %vm269, %v272, %v275
    %v277 = vsel %vm267, nan, %v276
    %v278 = vand.u32 2147483647, %v71
    %vm279 = vcmp.le.f32.partialorder %v278, 0.7853982
    %vm280 = vcmp.lt.s32.totalorder %v71, 0
    %v281 = vand.u32 %v71, 2139095040
    %v282 = vshrl.u32 %v281, 23
    %v283 = vsub.s32 %v282, 127
    %v284 = vand.u32 2147483647, %v71
    %v285 = vand.u32 %v284, 8388607
    %v286 = vor.u32 %v285, 8388608
    %v287 = vsub.s32 0, %v286
    %v288 = vadd.s32 %v283, 1
    %vm289 = vcmp.gt.s32.totalorder %v288, 0
    %v290 = vsel %vm289, %v288, 0
    %v291 = vshrl.u32 %v290, 5
    %v292 = vand.u32 %v290, 31
    %v293 = vsub.s32 32, %v292
    %v294 = vshrl.u32 683565275, %v293
    %v295 = vshll.u32 683565275, %v292
    %v296 = vshrl.u32 2475754826, %v293
    %v297 = vor.u32 %v295, %v296
    %v298 = vshll.u32 2475754826, %v292
    %v299 = vshrl.u32 2131351028, %v293
    %v300 = vor.u32 %v298, %v299
    %v301 = vshll.u32 2131351028, %v292
    %v302 = vshrl.u32 2102212464, %v293
    %v303 = vor.u32 %v301, %v302
    %v304 = vshll.u32 2102212464, %v292
    %v305 = vshrl.u32 920167782, %v293
    %v306 = vor.u32 %v304, %v305
    %v307 = vshll.u32 920167782, %v292
    %v308 = vshrl.u32 1326507024, %v293
    %v309 = vor.u32 %v307, %v308
    %vm310 = vcmp.lt.s32.totalorder %v291, 1
    %vm311 = vcmp.lt.s32.totalorder %v291, 2
    %vm312 = vcmp.lt.s32.totalorder %v291, 3
    %vm313 = vcmp.lt.s32.totalorder %v291, 4
    %v314 = vsel %vm310, %v294, %v297
    %v315 = vsel %vm313, %v303, 2102212464
    %v316 = vsel %vm312, %v300, %v315
    %v317 = vsel %vm311, %v314, %v316
    %v318 = vsel %vm310, %v297, %v300
    %v319 = vsel %vm313, %v306, 920167782
    %v320 = vsel %vm312, %v303, %v319
    %v321 = vsel %vm311, %v318, %v320
    %v322 = vsel %vm310, %v300, %v303
    %v323 = vsel %vm313, %v309, 1326507024
    %v324 = vsel %vm312, %v306, %v323
    %v325 = vsel %vm311, %v322, %v324
    %v326 = vshll.u32 %v286, 8
    %v327 = vmul.u32.u64.compose %v326, %v325
    %v328 = vextract.low.u32 %v327
    %v329 = vextract.high.u32 %v327
    %v330 = vmul.u32.u64.compose %v326, %v321
    %v331 = vextract.low.u32 %v330
    %v332 = vextract.high.u32 %v330
    %v333 = vmul.u32 %v326, %v317
    %v334 = vadd.s32 %v329, %v331
    %vm335 = vc.u32 %v329, %v331
    %v336 = vadd.s32 %v332, 1
    %v337 = vsel %vm335, %v336, %v332
    %v338 = vadd.s32 %v333, %v337
    %v339 = vadd.s32 %v338, 536870912
    %v340 = vshrl.u32 %v339, 30
    %v341 = vshll.u32 %v340, 30
    %v342 = vsub.s32 %v338, %v341
    %vm343 = vcmp.lt.s32.totalorder %v342, 0
    %v344 = vsub.s32 0, %v342
    %v345 = vsel %vm343, %v344, %v342
    %v346 = vclz %v345
    %v347 = vsub.s32 %v346, 2
    %vm348 = vcmp.gt.s32.totalorder 0, %v347
    %v349 = vsel %vm348, 0, %v347
    %v350 = vsub.s32 32, %v349
    %v351 = vshll.u32 %v342, %v349
    %v352 = vshrl.u32 %v334, %v350
    %v353 = vor.u32 %v351, %v352
    %v354 = vsub.s32 4294967266, %v349
    %v355 = vadd.s32 %v354, 127
    %v356 = vshll.u32 %v355, 23
    %v357 = vor.u32 4788187, %v356
    %v358 = vand.u32 2147483647, %v357
    %v360 = vcvt.s32.f32 %v353
    %v361 = vmul.f32 %v360, %v358
    %v362 = vxor.u32 %v361, 2147483648
    %v363 = vsel %vm280, %v362, %v361
    %v364 = vsub.s32 4, %v340
    %v365 = vsel %vm280, %v364, %v340
    %v366 = vsel %vm279, %v71, %v363
    %v367 = vsel %vm279, 0, %v365
    %v368 = vcosq.f32.pop %v366
    %v369 = vsinq.f32.pop %v366
    %vm370 = vweird.f32 %v71
    %v371 = vand.u32 %v367, 3
    %vm372 = vcmp.lt.s32.totalorder %v371, 2
    %vm373 = vcmp.eq.s32.totalorder %v371, 0
    %v374 = vxor.u32 %v369, 2147483648
    %v375 = vsel %vm373, %v368, %v374
    %vm376 = vcmp.eq.s32.totalorder %v371, 2
    %v377 = vxor.u32 %v368, 2147483648
    %v378 = vsel %vm376, %v377, %v369
    %v379 = vsel %vm372, %v375, %v378
    %v380 = vsel %vm370, nan, %v379
    %381 = vst [vmem:[#allocation2] sm:$0xff] %v174
    %382 = vst [vmem:[#allocation2 + $0x8] sm:$0xff] %v277
    %383 = vst [vmem:[#allocation2 + $0x10] sm:$0xff] %v380
    // Predicated region
    $region14: #{tpu_custom_call.1} parent=1 // pred_check
      _
    $region15: #{tpu_custom_call.1} parent=1 // pred_check_branch
      %385 = sbr.rel (0) target = $region17
    $region16: #{tpu_custom_call.1} parent=1 // pred_region
      %s387 = ssub.s32 384, 384
      %388 = vsyncadd [#allocation3], %s387
      %s389 = sshll.u32 [#allocation2], 4
      %s390 = int_to_ptr.vmem [resolvable:$true] %s389
      %395 = dma.vmem_to_hbm [thread:$0]  %s390, 384, %s3, [#allocation3], 128, 128, 8
    $region17: #{tpu_custom_call.1} parent=1 // pred_fallthru
      _
    // Predicated region
    $region18: #{tpu_custom_call.1} parent=1 // pred_check
      _
    $region19: #{tpu_custom_call.1} parent=1 // pred_check_branch
      %397 = sbr.rel (0) target = $region21
    $region20: #{tpu_custom_call.1} parent=1 // pred_region
      %398 = dma.done [#allocation3], 384
    $region21: #{tpu_custom_call.1} parent=1 // pred_fallthru
      _
    %399 = vsyncpa [#allocation3], 1

</llo_original>
